<compile_context>
chip_gen: v7x
topology: tpu7x:2x2x1
jax: 0.10.0
libtpu: 0.0.40
codegen_flags: <defaults>
</compile_context>

<pallas_src>
import functools
import numpy as np
import jax
import jax.numpy as jnp
from jax.experimental import pallas as pl
from jax.experimental.pallas import tpu as pltpu


# ---------------------------------------------------------------------------
# Pallas kernel: one batch tile (batch on lanes)
# ---------------------------------------------------------------------------
def quantum_policy_kernel(xt_ref, u_ref, w_ref, b_ref, policy_ref):
    # xt_ref     : (nq, Bt)    input angles, batch tile on lanes           (pipelined)
    # u_ref      : (D, D)      variational circuit unitary, bf16           (resident)
    # w_ref      : (A_pad, D)  policy weight pre-scaled by 1/T, bf16       (resident)
    # b_ref      : (A_pad, 1)  policy bias / T, f32 (-1e30 on pad rows)    (resident)
    # policy_ref : (A_pad, Bt) action distribution, batch on lanes
    xt = xt_ref[...]
    nq, _ = xt.shape
    c = jnp.cos(0.5 * xt)                  # RY(x)|0>: amp(|0>) = cos(x/2)
    s = jnp.sin(0.5 * xt)                  #           amp(|1>) = sin(x/2)

    # --- psi0 via Kronecker recursive doubling (qubit 0 = most-significant bit) ---
    # Base block over the (<=3) least-significant qubits is one vreg tall (<=8
    # sublanes, built with a tiny iota blend), so every later sublane concat is
    # 8-aligned.  Each remaining qubit doubles the state: psi -> [c_q*psi ; s_q*psi].
    # This replaces the old (D, nq) selector table and its per-qubit (D,1) lane
    # broadcasts: VPU work drops from ~2*nq*D*Bt to ~2*D*Bt ops.
    d = s - c
    n_base = min(nq, 3)
    q0 = nq - n_base
    rows = jax.lax.broadcasted_iota(jnp.int32, (1 << n_base, 1), 0)
    sel = ((rows >> (n_base - 1)) & 1).astype(jnp.float32)
    psi0 = c[q0:q0 + 1, :] + sel * d[q0:q0 + 1, :]          # first factor (no ones-init)
    for j in range(1, n_base):
        q = q0 + j
        sel = ((rows >> (n_base - 1 - j)) & 1).astype(jnp.float32)
        psi0 = psi0 * (c[q:q + 1, :] + sel * d[q:q + 1, :])
    for q in range(q0 - 1, -1, -1):                          # 8-aligned doubling
        psi0 = jnp.concatenate([c[q:q + 1, :] * psi0, s[q:q + 1, :] * psi0], axis=0)

    # --- circuit unitary on the MXU; batch tile is the wide N dimension ---
    wdt = u_ref.dtype
    psi = jnp.dot(u_ref[...], psi0.astype(wdt), preferred_element_type=jnp.float32)  # (D, Bt)
    psi_q = psi.astype(wdt)
    probs = psi_q * psi_q                  # |amplitude|^2 in weight dtype (circuit is real: RY+CNOT)

    # --- policy head: (W/T) @ probs + b/T, softmax over actions (sublane axis) ---
    logits = jnp.dot(w_ref[...], probs, preferred_element_type=jnp.float32) + b_ref[...]
    z = logits - jnp.max(logits, axis=0, keepdims=True)
    e = jnp.exp(z)
    inv = pl.reciprocal(jnp.sum(e, axis=0, keepdims=True), approx=True)   # EUP slot
    # TODO(synk): if a downstream sampler needs rows summing to 1 exactly, swap the
    # approx reciprocal (~1e-3 normalization error) for an exact divide.
    policy_ref[...] = e * inv


# ---------------------------------------------------------------------------
# Plain-JAX glue: fixed circuit unitary (parameter setup, runs once per call)
# ---------------------------------------------------------------------------
def _ry_matrix(theta):
    c = jnp.cos(theta / 2.0)
    s = jnp.sin(theta / 2.0)
    return jnp.stack([jnp.stack([c, -s]), jnp.stack([s, c])])


def _cnot_matrix(control, target, nq):
    D = 2 ** nq
    m = np.zeros((D, D), np.float32)
    for bb in range(D):
        cbit = (bb >> (nq - 1 - control)) & 1
        nb = bb ^ (1 << (nq - 1 - target)) if cbit == 1 else bb
        m[nb, bb] = 1.0
    return jnp.asarray(m)


def build_circuit_unitary(thetas, nq):
    """thetas: (L, nq). Real (D, D) unitary: L layers of RY rotations + CNOT ring."""
    D = 2 ** nq
    entangler = jnp.eye(D, dtype=jnp.float32)
    for q in range(nq):
        entangler = _cnot_matrix(q, (q + 1) % nq, nq) @ entangler
    U = jnp.eye(D, dtype=jnp.float32)
    for layer in range(thetas.shape[0]):
        rot = functools.reduce(jnp.kron, [_ry_matrix(thetas[layer, q]) for q in range(nq)])
        U = entangler @ rot @ U
    return U


def _device_kind():
    try:
        return jax.devices()[0].device_kind.lower()
    except Exception:
        return ""


# ---------------------------------------------------------------------------
# Wrapper
# ---------------------------------------------------------------------------
def quantum_policy_forward(x, thetas, W, b, T=1.0,
                           param_dtype=jnp.bfloat16, max_batch_tile=None):
    B, nq = x.shape
    D = 2 ** nq
    A = W.shape[0]
    A_pad = 8 * pl.cdiv(A, 8)              # full-sublane logits / softmax / store

    U = build_circuit_unitary(thetas, nq)  # (D, D) f32

    # Fold softmax temperature 1/T into the policy head once (guard T -> 0).
    t_eff = max(float(T), 1e-6)
    u_p = U.astype(param_dtype)
    w_p = jnp.zeros((A_pad, D), param_dtype).at[:A, :].set(
        (W.astype(jnp.float32) / t_eff).astype(param_dtype))
    # Padded action rows get a hugely negative bias -> zero softmax mass (no leakage).
    b_p = jnp.full((A_pad, 1), -1e30, jnp.float32).at[:A, 0].set(
        b.astype(jnp.float32) / t_eff)

    # --- batch tiling: batch on lanes, pad only to the next lane multiple (128) ---
    kind = _device_kind()
    multi_tc = 2 if ("v7" in kind or " v4" in kind or "v5p" in kind.replace(" ", "")) else 1
    b_pad = 128 * pl.cdiv(B, 128)
    if D <= 1024:
        bt_cap = 2048
    elif D <= 2048:
        bt_cap = 1024
    else:
        bt_cap = 512
    if max_batch_tile is not None:
        bt_cap = min(bt_cap, max_batch_tile)
    bt = max(128, min(bt_cap, b_pad))
    # Multi-TensorCore chips (v7x, megacore): ensure >=2 steps on the "parallel"
    # batch axis so the second core isn't idle.  Single-TC chips keep one big tile.
    if multi_tc > 1 and b_pad // bt < multi_tc and b_pad >= multi_tc * 128:
        bt = 128 * pl.cdiv(pl.cdiv(b_pad, multi_tc), 128)
    while b_pad % bt:                        # bt must divide the padded batch
        bt -= 128

    xT = jnp.zeros((nq, b_pad), jnp.float32).at[:, :B].set(x.astype(jnp.float32).T)

    # --- explicit VMEM budget so the compiler never silently spills the residents ---
    pbytes = jnp.zeros((), param_dtype).dtype.itemsize
    resident = 2 * ((D * D + A_pad * D) * pbytes + A_pad * 4)    # worst case: double-buffered
    pipelined = 2 * (nq + A_pad) * bt * 4
    live = 3 * D * bt * 4 + D * bt * pbytes + 2 * A_pad * bt * 4
    need = resident + pipelined + live
    vmem_cap = (60 if "v7" in kind else 96) * (1 << 20)          # 64 MiB physical on v7x
    vmem_limit = int(min(max(2 * need, 32 << 20), vmem_cap))
    # TODO(synk): for D >= 4096 tile the D contraction (extra "arbitrary" grid axis +
    # f32 accumulator scratch) and consider fp8 U/W on v7x instead of one resident
    # (D, D) bf16 unitary.

    def _run(single_buffer_consts):
        const_kw = dict(pipeline_mode=pl.Buffered(1)) if single_buffer_consts else {}
        return pl.pallas_call(
            quantum_policy_kernel,
            out_shape=jax.ShapeDtypeStruct((A_pad, b_pad), jnp.float32),
            grid_spec=pltpu.PrefetchScalarGridSpec(
                num_scalar_prefetch=0,
                grid=(b_pad // bt,),
                in_specs=[
                    pl.BlockSpec((nq, bt), lambda i: (0, i)),                 # x tile (pipelined)
                    pl.BlockSpec((D, D), lambda i: (0, 0), **const_kw),       # unitary  (resident)
                    pl.BlockSpec((A_pad, D), lambda i: (0, 0), **const_kw),   # policy W (resident)
                    pl.BlockSpec((A_pad, 1), lambda i: (0, 0), **const_kw),   # policy b (resident)
                ],
                out_specs=pl.BlockSpec((A_pad, bt), lambda i: (0, i)),
            ),
            compiler_params=pltpu.CompilerParams(
                dimension_semantics=("parallel",),       # batch axis -> megacore sharding
                vmem_limit_bytes=vmem_limit,
            ),
        )(xT, u_p, w_p, b_p)

    try:
        # Constant-index_map inputs never change across grid steps: single-buffer them
        # (halves resident VMEM for U/W -- what keeps large D inside v7x's 64 MiB VMEM
        # without shrinking the batch tile).
        policy_t = _run(True)
    except Exception:
        # pl.Buffered(1) not accepted by this jax/Mosaic build -> default buffering.
        policy_t = _run(False)

    return policy_t[:A, :B].T                                    # (B, A)


# ---------------------------------------------------------------------------
# Pure-JAX reference (same bf16 weight/probs quantization) for correctness check
# ---------------------------------------------------------------------------
def _reference_forward(x, thetas, W, b, T, param_dtype=jnp.bfloat16):
    B, nq = x.shape
    U = build_circuit_unitary(thetas, nq).astype(param_dtype)
    c = jnp.cos(0.5 * x)                     # (B, nq)
    s = jnp.sin(0.5 * x)
    psi0 = jnp.concatenate([c[:, nq - 1:nq], s[:, nq - 1:nq]], axis=1)    # (B, 2)
    for q in range(nq - 2, -1, -1):          # same Kronecker recursion, batch-major
        psi0 = jnp.concatenate([c[:, q:q + 1] * psi0, s[:, q:q + 1] * psi0], axis=1)
    psi = jnp.dot(psi0.astype(param_dtype), U.T, preferred_element_type=jnp.float32)
    psi_q = psi.astype(param_dtype)
    probs = psi_q * psi_q
    t_eff = max(float(T), 1e-6)
    w_p = (W.astype(jnp.float32) / t_eff).astype(param_dtype)
    b_p = b.astype(jnp.float32) / t_eff
    logits = jnp.dot(probs, w_p.T, preferred_element_type=jnp.float32) + b_p[None, :]
    return jax.nn.softmax(logits, axis=-1)


# ---------------------------------------------------------------------------
# Demo
# ---------------------------------------------------------------------------
if __name__ == "__main__":
    key = jax.random.PRNGKey(0)
    k_x, k_th, k_w, k_b = jax.random.split(key, 4)

    B = 8          # batch
    NQ = 4         # qubits -> 2**4 = 16 basis states
    L = 2          # variational layers
    A = 4          # actions

    x = jax.random.uniform(k_x, (B, NQ), jnp.float32, minval=-jnp.pi, maxval=jnp.pi)
    thetas = jax.random.normal(k_th, (L, NQ), jnp.float32) * 0.3
    W = jax.random.normal(k_w, (A, 2 ** NQ), jnp.float32) * 0.5
    b = jax.random.normal(k_b, (A,), jnp.float32) * 0.1
    T = 1.0        # policy temperature (see T_schedule in the PyTorch module)

    policy = quantum_policy_forward(x, thetas, W, b, T)
    policy = jax.block_until_ready(policy)

    # sanity: shape + valid probability distribution per row
    assert policy.shape == (B, A)
    row_sums = np.asarray(jnp.sum(policy, axis=-1))
    assert np.allclose(row_sums, 1.0, atol=5e-3), row_sums

    # compare against a pure-JAX reference with the same bf16 quantization
    ref = np.asarray(_reference_forward(x, thetas, W, b, T))
    assert np.allclose(np.asarray(policy), ref, atol=2e-2), \
        float(np.abs(np.asarray(policy) - ref).max())

    # TODO(synk): .sample() uses torch.distributions.Categorical (host-side RNG +
    # .item()) and T_schedule is a host-side training schedule; neither belongs in
    # the forward kernel (T is folded into the policy weights at call time).
    print("KERNEL_OK")
</pallas_src>

<mosaic_0001>
module attributes {stable_mosaic.version = 11 : i64} {
  func.func @quantum_policy_kernel(%arg0: i32, %arg1: memref<4x128xf32, #tpu.memory_space<vmem>>, %arg2: memref<16x16xbf16, #tpu.memory_space<vmem>>, %arg3: memref<8x16xbf16, #tpu.memory_space<vmem>>, %arg4: memref<8x1xf32, #tpu.memory_space<vmem>>, %arg5: memref<8x128xf32, #tpu.memory_space<vmem>>) attributes {dimension_semantics = [#tpu.dimension_semantics<parallel>], iteration_bounds = array<i64: 1>, scalar_prefetch = 0 : i64, scratch_operands = 0 : i64, tpu.core_type = #tpu.core_type<tc>, window_params = [{transform_indices = @transform_0, window_bounds = array<i64: 4, 128>}, {pipeline_mode = #tpu.pipeline_mode<synchronous>, transform_indices = @transform_1, window_bounds = array<i64: 16, 16>}, {pipeline_mode = #tpu.pipeline_mode<synchronous>, transform_indices = @transform_2, window_bounds = array<i64: 8, 16>}, {pipeline_mode = #tpu.pipeline_mode<synchronous>, transform_indices = @transform_3, window_bounds = array<i64: 8, 1>}, {transform_indices = @transform_4, window_bounds = array<i64: 8, 128>}]} {
    %c0 = arith.constant 0 : index
    %c0_0 = arith.constant 0 : index
    %0 = vector.load %arg1[%c0, %c0_0] : memref<4x128xf32, #tpu.memory_space<vmem>>, vector<4x128xf32>
    %cst = arith.constant 5.000000e-01 : f32
    %1 = vector.broadcast %cst : f32 to vector<4x128xf32>
    %2 = arith.mulf %1, %0 : vector<4x128xf32>
    %3 = math.cos %2 : vector<4x128xf32>
    %cst_1 = arith.constant 5.000000e-01 : f32
    %4 = vector.broadcast %cst_1 : f32 to vector<4x128xf32>
    %5 = arith.mulf %4, %0 : vector<4x128xf32>
    %6 = math.sin %5 : vector<4x128xf32>
    %7 = arith.subf %6, %3 : vector<4x128xf32>
    %8 = tpu.iota {dimensions = array<i32: 0>} : vector<8x1xi32>
    %c2_i32 = arith.constant 2 : i32
    %9 = vector.broadcast %c2_i32 : i32 to vector<8x1xi32>
    %10 = arith.shrsi %8, %9 : vector<8x1xi32>
    %c1_i32 = arith.constant 1 : i32
    %11 = vector.broadcast %c1_i32 : i32 to vector<8x1xi32>
    %12 = arith.andi %10, %11 : vector<8x1xi32>
    %13 = arith.sitofp %12 : vector<8x1xi32> to vector<8x1xf32>
    %14 = vector.extract_strided_slice %3 {offsets = [1, 0], sizes = [1, 128], strides = [1, 1]} : vector<4x128xf32> to vector<1x128xf32>
    %15 = vector.extract_strided_slice %7 {offsets = [1, 0], sizes = [1, 128], strides = [1, 1]} : vector<4x128xf32> to vector<1x128xf32>
    %16 = vector.broadcast %13 : vector<8x1xf32> to vector<8x128xf32>
    %17 = vector.broadcast %15 : vector<1x128xf32> to vector<8x128xf32>
    %18 = arith.mulf %16, %17 : vector<8x128xf32>
    %19 = vector.broadcast %14 : vector<1x128xf32> to vector<8x128xf32>
    %20 = arith.addf %19, %18 : vector<8x128xf32>
    %c1_i32_2 = arith.constant 1 : i32
    %21 = vector.broadcast %c1_i32_2 : i32 to vector<8x1xi32>
    %22 = arith.shrsi %8, %21 : vector<8x1xi32>
    %c1_i32_3 = arith.constant 1 : i32
    %23 = vector.broadcast %c1_i32_3 : i32 to vector<8x1xi32>
    %24 = arith.andi %22, %23 : vector<8x1xi32>
    %25 = arith.sitofp %24 : vector<8x1xi32> to vector<8x1xf32>
    %26 = vector.extract_strided_slice %3 {offsets = [2, 0], sizes = [1, 128], strides = [1, 1]} : vector<4x128xf32> to vector<1x128xf32>
    %27 = vector.extract_strided_slice %7 {offsets = [2, 0], sizes = [1, 128], strides = [1, 1]} : vector<4x128xf32> to vector<1x128xf32>
    %28 = vector.broadcast %25 : vector<8x1xf32> to vector<8x128xf32>
    %29 = vector.broadcast %27 : vector<1x128xf32> to vector<8x128xf32>
    %30 = arith.mulf %28, %29 : vector<8x128xf32>
    %31 = vector.broadcast %26 : vector<1x128xf32> to vector<8x128xf32>
    %32 = arith.addf %31, %30 : vector<8x128xf32>
    %33 = arith.mulf %20, %32 : vector<8x128xf32>
    %c0_i32 = arith.constant 0 : i32
    %34 = vector.broadcast %c0_i32 : i32 to vector<8x1xi32>
    %35 = arith.shrsi %8, %34 : vector<8x1xi32>
    %c1_i32_4 = arith.constant 1 : i32
    %36 = vector.broadcast %c1_i32_4 : i32 to vector<8x1xi32>
    %37 = arith.andi %35, %36 : vector<8x1xi32>
    %38 = arith.sitofp %37 : vector<8x1xi32> to vector<8x1xf32>
    %39 = vector.extract_strided_slice %3 {offsets = [3, 0], sizes = [1, 128], strides = [1, 1]} : vector<4x128xf32> to vector<1x128xf32>
    %40 = vector.extract_strided_slice %7 {offsets = [3, 0], sizes = [1, 128], strides = [1, 1]} : vector<4x128xf32> to vector<1x128xf32>
    %41 = vector.broadcast %38 : vector<8x1xf32> to vector<8x128xf32>
    %42 = vector.broadcast %40 : vector<1x128xf32> to vector<8x128xf32>
    %43 = arith.mulf %41, %42 : vector<8x128xf32>
    %44 = vector.broadcast %39 : vector<1x128xf32> to vector<8x128xf32>
    %45 = arith.addf %44, %43 : vector<8x128xf32>
    %46 = arith.mulf %33, %45 : vector<8x128xf32>
    %47 = vector.extract_strided_slice %3 {offsets = [0, 0], sizes = [1, 128], strides = [1, 1]} : vector<4x128xf32> to vector<1x128xf32>
    %48 = vector.broadcast %47 : vector<1x128xf32> to vector<8x128xf32>
    %49 = arith.mulf %48, %46 : vector<8x128xf32>
    %50 = vector.extract_strided_slice %6 {offsets = [0, 0], sizes = [1, 128], strides = [1, 1]} : vector<4x128xf32> to vector<1x128xf32>
    %51 = vector.broadcast %50 : vector<1x128xf32> to vector<8x128xf32>
    %52 = arith.mulf %51, %46 : vector<8x128xf32>
    %53 = tpu.concatenate %49, %52 in 0 : vector<8x128xf32>, vector<8x128xf32> -> vector<16x128xf32>
    %c0_5 = arith.constant 0 : index
    %c0_6 = arith.constant 0 : index
    %54 = vector.load %arg2[%c0_5, %c0_6] : memref<16x16xbf16, #tpu.memory_space<vmem>>, vector<16x16xbf16>
    %55 = arith.truncf %53 : vector<16x128xf32> to vector<16x128xbf16>
    %cst_7 = arith.constant dense<0.000000e+00> : vector<16x128xf32>
    %56 = tpu.matmul %54, %55, %cst_7 {dimension_numbers = #tpu.dot_dimension_numbers<[1], [0], [0], [1], [0, 0, 1, 1], [], []>} : vector<16x16xbf16>, vector<16x128xbf16>, vector<16x128xf32> -> vector<16x128xf32>
    %57 = arith.truncf %56 : vector<16x128xf32> to vector<16x128xbf16>
    %58 = arith.mulf %57, %57 : vector<16x128xbf16>
    %c0_8 = arith.constant 0 : index
    %c0_9 = arith.constant 0 : index
    %59 = vector.load %arg3[%c0_8, %c0_9] : memref<8x16xbf16, #tpu.memory_space<vmem>>, vector<8x16xbf16>
    %cst_10 = arith.constant dense<0.000000e+00> : vector<8x128xf32>
    %60 = tpu.matmul %59, %58, %cst_10 {dimension_numbers = #tpu.dot_dimension_numbers<[1], [0], [0], [1], [0, 0, 1, 1], [], []>} : vector<8x16xbf16>, vector<16x128xbf16>, vector<8x128xf32> -> vector<8x128xf32>
    %c0_11 = arith.constant 0 : index
    %c0_12 = arith.constant 0 : index
    %61 = vector.load %arg4[%c0_11, %c0_12] : memref<8x1xf32, #tpu.memory_space<vmem>>, vector<8x1xf32>
    %62 = vector.broadcast %61 : vector<8x1xf32> to vector<8x128xf32>
    %63 = arith.addf %60, %62 : vector<8x128xf32>
    %cst_13 = arith.constant dense<0xFF800000> : vector<128xf32>
    %64 = vector.multi_reduction <maximumf>, %63, %cst_13 [0] : vector<8x128xf32> to vector<128xf32>
    %65 = vector.shape_cast %64 : vector<128xf32> to vector<1x128xf32>
    %66 = vector.broadcast %65 : vector<1x128xf32> to vector<8x128xf32>
    %67 = arith.subf %63, %66 : vector<8x128xf32>
    %68 = math.exp %67 : vector<8x128xf32>
    %cst_14 = arith.constant dense<0.000000e+00> : vector<128xf32>
    %69 = vector.multi_reduction <add>, %68, %cst_14 [0] : vector<8x128xf32> to vector<128xf32>
    %70 = vector.shape_cast %69 : vector<128xf32> to vector<1x128xf32>
    %71 = tpu.reciprocal %70 {approx = true} : vector<1x128xf32> -> vector<1x128xf32>
    %72 = vector.broadcast %71 : vector<1x128xf32> to vector<8x128xf32>
    %73 = arith.mulf %68, %72 : vector<8x128xf32>
    %c0_15 = arith.constant 0 : index
    %c0_16 = arith.constant 0 : index
    %74 = vector.load %arg5[%c0_15, %c0_16] : memref<8x128xf32, #tpu.memory_space<vmem>>, vector<8x128xf32>
    tpu.vector_store %arg5[%c0_15, %c0_16], %73 {strides = array<i32>} : memref<8x128xf32, #tpu.memory_space<vmem>>, vector<8x128xf32>,
    return
  }
  func.func @transform_0(%arg0: i32) -> (i32, i32) {
    %c0_i32 = arith.constant 0 : i32
    %c0_i32_0 = arith.constant 0 : i32
    return %c0_i32, %arg0 : i32, i32
  }
  func.func @transform_1(%arg0: i32) -> (i32, i32) {
    %c0_i32 = arith.constant 0 : i32
    %c0_i32_0 = arith.constant 0 : i32
    %c0_i32_1 = arith.constant 0 : i32
    return %c0_i32, %c0_i32_0 : i32, i32
  }
  func.func @transform_2(%arg0: i32) -> (i32, i32) {
    %c0_i32 = arith.constant 0 : i32
    %c0_i32_0 = arith.constant 0 : i32
    %c0_i32_1 = arith.constant 0 : i32
    return %c0_i32, %c0_i32_0 : i32, i32
  }
  func.func @transform_3(%arg0: i32) -> (i32, i32) {
    %c0_i32 = arith.constant 0 : i32
    %c0_i32_0 = arith.constant 0 : i32
    %c0_i32_1 = arith.constant 0 : i32
    return %c0_i32, %c0_i32_0 : i32, i32
  }
  func.func @transform_4(%arg0: i32) -> (i32, i32) {
    %c0_i32 = arith.constant 0 : i32
    %c0_i32_0 = arith.constant 0 : i32
    return %c0_i32, %arg0 : i32, i32
  }
}

module attributes {stable_mosaic.version = 11 : i64} {
  func.func @quantum_policy_kernel(%arg0: i32, %arg1: memref<4x128xf32, #tpu.memory_space<vmem>>, %arg2: memref<16x16xbf16, #tpu.memory_space<vmem>>, %arg3: memref<8x16xbf16, #tpu.memory_space<vmem>>, %arg4: memref<8x1xf32, #tpu.memory_space<vmem>>, %arg5: memref<8x128xf32, #tpu.memory_space<vmem>>) attributes {dimension_semantics = [#tpu.dimension_semantics<parallel>], iteration_bounds = array<i64: 1>, scalar_prefetch = 0 : i64, scratch_operands = 0 : i64, tpu.core_type = #tpu.core_type<tc>, window_params = [{transform_indices = @transform_0, window_bounds = array<i64: 4, 128>}, {pipeline_mode = #tpu.pipeline_mode<synchronous>, transform_indices = @transform_1, window_bounds = array<i64: 16, 16>}, {pipeline_mode = #tpu.pipeline_mode<synchronous>, transform_indices = @transform_2, window_bounds = array<i64: 8, 16>}, {pipeline_mode = #tpu.pipeline_mode<synchronous>, transform_indices = @transform_3, window_bounds = array<i64: 8, 1>}, {transform_indices = @transform_4, window_bounds = array<i64: 8, 128>}]} {
    %c0 = arith.constant 0 : index
    %c0_0 = arith.constant 0 : index
    %0 = vector.load %arg1[%c0, %c0_0] : memref<4x128xf32, #tpu.memory_space<vmem>>, vector<4x128xf32>
    %cst = arith.constant 5.000000e-01 : f32
    %1 = vector.broadcast %cst : f32 to vector<4x128xf32>
    %2 = arith.mulf %1, %0 : vector<4x128xf32>
    %3 = math.cos %2 : vector<4x128xf32>
    %cst_1 = arith.constant 5.000000e-01 : f32
    %4 = vector.broadcast %cst_1 : f32 to vector<4x128xf32>
    %5 = arith.mulf %4, %0 : vector<4x128xf32>
    %6 = math.sin %5 : vector<4x128xf32>
    %7 = arith.subf %6, %3 : vector<4x128xf32>
    %8 = tpu.iota {dimensions = array<i32: 0>} : vector<8x1xi32>
    %c2_i32 = arith.constant 2 : i32
    %9 = vector.broadcast %c2_i32 : i32 to vector<8x1xi32>
    %10 = arith.shrsi %8, %9 : vector<8x1xi32>
    %c1_i32 = arith.constant 1 : i32
    %11 = vector.broadcast %c1_i32 : i32 to vector<8x1xi32>
    %12 = arith.andi %10, %11 : vector<8x1xi32>
    %13 = arith.sitofp %12 : vector<8x1xi32> to vector<8x1xf32>
    %14 = vector.extract_strided_slice %3 {offsets = [1, 0], sizes = [1, 128], strides = [1, 1]} : vector<4x128xf32> to vector<1x128xf32>
    %15 = vector.extract_strided_slice %7 {offsets = [1, 0], sizes = [1, 128], strides = [1, 1]} : vector<4x128xf32> to vector<1x128xf32>
    %16 = vector.broadcast %13 : vector<8x1xf32> to vector<8x128xf32>
    %17 = vector.broadcast %15 : vector<1x128xf32> to vector<8x128xf32>
    %18 = arith.mulf %16, %17 : vector<8x128xf32>
    %19 = vector.broadcast %14 : vector<1x128xf32> to vector<8x128xf32>
    %20 = arith.addf %19, %18 : vector<8x128xf32>
    %c1_i32_2 = arith.constant 1 : i32
    %21 = vector.broadcast %c1_i32_2 : i32 to vector<8x1xi32>
    %22 = arith.shrsi %8, %21 : vector<8x1xi32>
    %c1_i32_3 = arith.constant 1 : i32
    %23 = vector.broadcast %c1_i32_3 : i32 to vector<8x1xi32>
    %24 = arith.andi %22, %23 : vector<8x1xi32>
    %25 = arith.sitofp %24 : vector<8x1xi32> to vector<8x1xf32>
    %26 = vector.extract_strided_slice %3 {offsets = [2, 0], sizes = [1, 128], strides = [1, 1]} : vector<4x128xf32> to vector<1x128xf32>
    %27 = vector.extract_strided_slice %7 {offsets = [2, 0], sizes = [1, 128], strides = [1, 1]} : vector<4x128xf32> to vector<1x128xf32>
    %28 = vector.broadcast %25 : vector<8x1xf32> to vector<8x128xf32>
    %29 = vector.broadcast %27 : vector<1x128xf32> to vector<8x128xf32>
    %30 = arith.mulf %28, %29 : vector<8x128xf32>
    %31 = vector.broadcast %26 : vector<1x128xf32> to vector<8x128xf32>
    %32 = arith.addf %31, %30 : vector<8x128xf32>
    %33 = arith.mulf %20, %32 : vector<8x128xf32>
    %c0_i32 = arith.constant 0 : i32
    %34 = vector.broadcast %c0_i32 : i32 to vector<8x1xi32>
    %35 = arith.shrsi %8, %34 : vector<8x1xi32>
    %c1_i32_4 = arith.constant 1 : i32
    %36 = vector.broadcast %c1_i32_4 : i32 to vector<8x1xi32>
    %37 = arith.andi %35, %36 : vector<8x1xi32>
    %38 = arith.sitofp %37 : vector<8x1xi32> to vector<8x1xf32>
    %39 = vector.extract_strided_slice %3 {offsets = [3, 0], sizes = [1, 128], strides = [1, 1]} : vector<4x128xf32> to vector<1x128xf32>
    %40 = vector.extract_strided_slice %7 {offsets = [3, 0], sizes = [1, 128], strides = [1, 1]} : vector<4x128xf32> to vector<1x128xf32>
    %41 = vector.broadcast %38 : vector<8x1xf32> to vector<8x128xf32>
    %42 = vector.broadcast %40 : vector<1x128xf32> to vector<8x128xf32>
    %43 = arith.mulf %41, %42 : vector<8x128xf32>
    %44 = vector.broadcast %39 : vector<1x128xf32> to vector<8x128xf32>
    %45 = arith.addf %44, %43 : vector<8x128xf32>
    %46 = arith.mulf %33, %45 : vector<8x128xf32>
    %47 = vector.extract_strided_slice %3 {offsets = [0, 0], sizes = [1, 128], strides = [1, 1]} : vector<4x128xf32> to vector<1x128xf32>
    %48 = vector.broadcast %47 : vector<1x128xf32> to vector<8x128xf32>
    %49 = arith.mulf %48, %46 : vector<8x128xf32>
    %50 = vector.extract_strided_slice %6 {offsets = [0, 0], sizes = [1, 128], strides = [1, 1]} : vector<4x128xf32> to vector<1x128xf32>
    %51 = vector.broadcast %50 : vector<1x128xf32> to vector<8x128xf32>
    %52 = arith.mulf %51, %46 : vector<8x128xf32>
    %53 = tpu.concatenate %49, %52 in 0 : vector<8x128xf32>, vector<8x128xf32> -> vector<16x128xf32>
    %c0_5 = arith.constant 0 : index
    %c0_6 = arith.constant 0 : index
    %54 = vector.load %arg2[%c0_5, %c0_6] : memref<16x16xbf16, #tpu.memory_space<vmem>>, vector<16x16xbf16>
    %55 = arith.truncf %53 : vector<16x128xf32> to vector<16x128xbf16>
    %cst_7 = arith.constant dense<0.000000e+00> : vector<16x128xf32>
    %56 = tpu.matmul %54, %55, %cst_7 {dimension_numbers = #tpu.dot_dimension_numbers<[1], [0], [0], [1], [0, 0, 1, 1], [], []>} : vector<16x16xbf16>, vector<16x128xbf16>, vector<16x128xf32> -> vector<16x128xf32>
    %57 = arith.truncf %56 : vector<16x128xf32> to vector<16x128xbf16>
    %58 = arith.mulf %57, %57 : vector<16x128xbf16>
    %c0_8 = arith.constant 0 : index
    %c0_9 = arith.constant 0 : index
    %59 = vector.load %arg3[%c0_8, %c0_9] : memref<8x16xbf16, #tpu.memory_space<vmem>>, vector<8x16xbf16>
    %cst_10 = arith.constant dense<0.000000e+00> : vector<8x128xf32>
    %60 = tpu.matmul %59, %58, %cst_10 {dimension_numbers = #tpu.dot_dimension_numbers<[1], [0], [0], [1], [0, 0, 1, 1], [], []>} : vector<8x16xbf16>, vector<16x128xbf16>, vector<8x128xf32> -> vector<8x128xf32>
    %c0_11 = arith.constant 0 : index
    %c0_12 = arith.constant 0 : index
    %61 = vector.load %arg4[%c0_11, %c0_12] : memref<8x1xf32, #tpu.memory_space<vmem>>, vector<8x1xf32>
    %62 = vector.broadcast %61 : vector<8x1xf32> to vector<8x128xf32>
    %63 = arith.addf %60, %62 : vector<8x128xf32>
    %cst_13 = arith.constant dense<0xFF800000> : vector<128xf32>
    %64 = vector.multi_reduction <maximumf>, %63, %cst_13 [0] : vector<8x128xf32> to vector<128xf32>
    %65 = vector.shape_cast %64 : vector<128xf32> to vector<1x128xf32>
    %66 = vector.broadcast %65 : vector<1x128xf32> to vector<8x128xf32>
    %67 = arith.subf %63, %66 : vector<8x128xf32>
    %68 = math.exp %67 : vector<8x128xf32>
    %cst_14 = arith.constant dense<0.000000e+00> : vector<128xf32>
    %69 = vector.multi_reduction <add>, %68, %cst_14 [0] : vector<8x128xf32> to vector<128xf32>
    %70 = vector.shape_cast %69 : vector<128xf32> to vector<1x128xf32>
    %71 = tpu.reciprocal %70 {approx = true} : vector<1x128xf32> -> vector<1x128xf32>
    %72 = vector.broadcast %71 : vector<1x128xf32> to vector<8x128xf32>
    %73 = arith.mulf %68, %72 : vector<8x128xf32>
    %c0_15 = arith.constant 0 : index
    %c0_16 = arith.constant 0 : index
    %74 = vector.load %arg5[%c0_15, %c0_16] : memref<8x128xf32, #tpu.memory_space<vmem>>, vector<8x128xf32>
    tpu.vector_store %arg5[%c0_15, %c0_16], %73 {strides = array<i32>} : memref<8x128xf32, #tpu.memory_space<vmem>>, vector<8x128xf32>,
    return
  }
  func.func @transform_0(%arg0: i32) -> (i32, i32) {
    %c0_i32 = arith.constant 0 : i32
    %c0_i32_0 = arith.constant 0 : i32
    return %c0_i32, %arg0 : i32, i32
  }
  func.func @transform_1(%arg0: i32) -> (i32, i32) {
    %c0_i32 = arith.constant 0 : i32
    %c0_i32_0 = arith.constant 0 : i32
    %c0_i32_1 = arith.constant 0 : i32
    return %c0_i32, %c0_i32_0 : i32, i32
  }
  func.func @transform_2(%arg0: i32) -> (i32, i32) {
    %c0_i32 = arith.constant 0 : i32
    %c0_i32_0 = arith.constant 0 : i32
    %c0_i32_1 = arith.constant 0 : i32
    return %c0_i32, %c0_i32_0 : i32, i32
  }
  func.func @transform_3(%arg0: i32) -> (i32, i32) {
    %c0_i32 = arith.constant 0 : i32
    %c0_i32_0 = arith.constant 0 : i32
    %c0_i32_1 = arith.constant 0 : i32
    return %c0_i32, %c0_i32_0 : i32, i32
  }
  func.func @transform_4(%arg0: i32) -> (i32, i32) {
    %c0_i32 = arith.constant 0 : i32
    %c0_i32_0 = arith.constant 0 : i32
    return %c0_i32, %arg0 : i32, i32
  }
}

</mosaic_0001>

<llo_original>
// kernel: tpu_custom_call.1
$region0: #{tpu_custom_call.1}
  #allocation0 [shape = 'u32[]', space=smem, size = 0x4, offset = 0x4, fixed_abs, tag = 'smem constant byte address 0x4 - core index']
  #allocation1 [shape = 'u32[144,128]{1,0:T(1,128)}', space=vmem, size = 0x12000, scoped, tag = 'internal scratch']
  %s0 = inlined_call_operand.vmem [shape: f32[4,128], index: 0, kind: input, shape index: {}]
  %s1 = inlined_call_operand.vmem [shape: bf16[16,16], index: 1, kind: input, shape index: {}]
  %s2 = inlined_call_operand.vmem [shape: bf16[8,16], index: 2, kind: input, shape index: {}]
  %s3 = inlined_call_operand.vmem [shape: f32[8,1], index: 3, kind: input, shape index: {}]
  %s4 = inlined_call_operand.hbm [shape: f32[8,128], index: 4, kind: output, shape index: {}]
  %s5 = sld [smem:[#allocation0]]
  $region26: #{tpu_custom_call.1} parent=0
    _
  %s7 = ssub.s32 1, %s5
  %s8 = scalar_select 0, %s7, %s5
  $region1: #{tpu_custom_call.1} parent=0
    #allocation2 [shape = 'u8[4096]{0}', space=vmem, size = 0x1000, scoped, tag = 'output window, operand 0, single buffered']
    #allocation3 [shape = 's32[1]{0}', space=sflag, size = 0x4, scoped, tag = 'scoped memory for tpu_custom_call.1']
    %9 = vsyncpa [#allocation3], 0
    // Predicated region
    $region2: #{tpu_custom_call.1} parent=1 // pred_check
      _
    $region3: #{tpu_custom_call.1} parent=1 // pred_check_branch
      %11 = sbr.rel (0) target = $region5
    $region4: #{tpu_custom_call.1} parent=1 // pred_region
      _
    $region5: #{tpu_custom_call.1} parent=1 // pred_fallthru
      _
    // Predicated region
    $region6: #{tpu_custom_call.1} parent=1 // pred_check
      _
    $region7: #{tpu_custom_call.1} parent=1 // pred_check_branch
      %13 = sbr.rel (0) target = $region9
    $region8: #{tpu_custom_call.1} parent=1 // pred_region
      _
    $region9: #{tpu_custom_call.1} parent=1 // pred_fallthru
      _
    // Predicated region
    $region10: #{tpu_custom_call.1} parent=1 // pred_check
      _
    $region11: #{tpu_custom_call.1} parent=1 // pred_check_branch
      %15 = sbr.rel (0) target = $region13
    $region12: #{tpu_custom_call.1} parent=1 // pred_region
      _
    $region13: #{tpu_custom_call.1} parent=1 // pred_fallthru
      _
    // Predicated region
    $region14: #{tpu_custom_call.1} parent=1 // pred_check
      _
    $region15: #{tpu_custom_call.1} parent=1 // pred_check_branch
      %17 = sbr.rel (0) target = $region17
    $region16: #{tpu_custom_call.1} parent=1 // pred_region
      _
    $region17: #{tpu_custom_call.1} parent=1 // pred_fallthru
      _
    %v19 = vld [vmem:[%s0] sm:$0xf]
    %v20 = vmul.f32 %v19, 0.5
    %v21 = vand.u32 2147483647, %v20
    %vm22 = vcmp.le.f32.partialorder %v21, 0.7853982
    %vm23 = vcmp.lt.s32.totalorder %v20, 0
    %v24 = vand.u32 %v20, 2139095040
    %v25 = vshrl.u32 %v24, 23
    %v26 = vsub.s32 %v25, 127
    %v27 = vand.u32 2147483647, %v20
    %v28 = vand.u32 %v27, 8388607
    %v29 = vor.u32 %v28, 8388608
    %v30 = vsub.s32 0, %v29
    %v31 = vadd.s32 %v26, 1
    %vm32 = vcmp.gt.s32.totalorder %v31, 0
    %v33 = vsel %vm32, %v31, 0
    %v34 = vshrl.u32 %v33, 5
    %v35 = vand.u32 %v33, 31
    %v36 = vsub.s32 32, %v35
    %v37 = vshrl.u32 683565275, %v36
    %v38 = vshll.u32 683565275, %v35
    %v39 = vshrl.u32 2475754826, %v36
    %v40 = vor.u32 %v38, %v39
    %v41 = vshll.u32 2475754826, %v35
    %v42 = vshrl.u32 2131351028, %v36
    %v43 = vor.u32 %v41, %v42
    %v44 = vshll.u32 2131351028, %v35
    %v45 = vshrl.u32 2102212464, %v36
    %v46 = vor.u32 %v44, %v45
    %v47 = vshll.u32 2102212464, %v35
    %v48 = vshrl.u32 920167782, %v36
    %v49 = vor.u32 %v47, %v48
    %v50 = vshll.u32 920167782, %v35
    %v51 = vshrl.u32 1326507024, %v36
    %v52 = vor.u32 %v50, %v51
    %vm53 = vcmp.lt.s32.totalorder %v34, 1
    %vm54 = vcmp.lt.s32.totalorder %v34, 2
    %vm55 = vcmp.lt.s32.totalorder %v34, 3
    %vm56 = vcmp.lt.s32.totalorder %v34, 4
    %v57 = vsel %vm53, %v37, %v40
    %v58 = vsel %vm56, %v46, 2102212464
    %v59 = vsel %vm55, %v43, %v58
    %v60 = vsel %vm54, %v57, %v59
    %v61 = vsel %vm53, %v40, %v43
    %v62 = vsel %vm56, %v49, 920167782
    %v63 = vsel %vm55, %v46, %v62
    %v64 = vsel %vm54, %v61, %v63
    %v65 = vsel %vm53, %v43, %v46
    %v66 = vsel %vm56, %v52, 1326507024
    %v67 = vsel %vm55, %v49, %v66
    %v68 = vsel %vm54, %v65, %v67
    %v69 = vshll.u32 %v29, 8
    %v70 = vmul.u32.u64.compose %v69, %v68
    %v71 = vextract.low.u32 %v70
    %v72 = vextract.high.u32 %v70
    %v73 = vmul.u32.u64.compose %v69, %v64
    %v74 = vextract.low.u32 %v73
    %v75 = vextract.high.u32 %v73
    %v76 = vmul.u32 %v69, %v60
    %v77 = vadd.s32 %v72, %v74
    %vm78 = vc.u32 %v72, %v74
    %v79 = vadd.s32 %v75, 1
    %v80 = vsel %vm78, %v79, %v75
    %v81 = vadd.s32 %v76, %v80
    %v82 = vadd.s32 %v81, 536870912
    %v83 = vshrl.u32 %v82, 30
    %v84 = vshll.u32 %v83, 30
    %v85 = vsub.s32 %v81, %v84
    %vm86 = vcmp.lt.s32.totalorder %v85, 0
    %v87 = vsub.s32 0, %v85
    %v88 = vsel %vm86, %v87, %v85
    %v89 = vclz %v88
    %v90 = vsub.s32 %v89, 2
    %vm91 = vcmp.gt.s32.totalorder 0, %v90
    %v92 = vsel %vm91, 0, %v90
    %v93 = vsub.s32 32, %v92
    %v94 = vshll.u32 %v85, %v92
    %v95 = vshrl.u32 %v77, %v93
    %v96 = vor.u32 %v94, %v95
    %v97 = vsub.s32 4294967266, %v92
    %v98 = vadd.s32 %v97, 127
    %v99 = vshll.u32 %v98, 23
    %v100 = vor.u32 4788187, %v99
    %v101 = vand.u32 2147483647, %v100
    %v103 = vcvt.s32.f32 %v96
    %v104 = vmul.f32 %v103, %v101
    %v105 = vxor.u32 %v104, 2147483648
    %v106 = vsel %vm23, %v105, %v104
    %v107 = vsub.s32 4, %v83
    %v108 = vsel %vm23, %v107, %v83
    %v109 = vsel %vm22, %v20, %v106
    %v110 = vsel %vm22, 0, %v108
    %v111 = vcosq.f32.pop %v109
    %v112 = vsinq.f32.pop %v109
    %vm113 = vweird.f32 %v20
    %v114 = vand.u32 %v110, 3
    %vm115 = vcmp.lt.s32.totalorder %v114, 2
    %vm116 = vcmp.eq.s32.totalorder %v114, 0
    %v117 = vxor.u32 %v112, 2147483648
    %v118 = vsel %vm116, %v111, %v117
    %vm119 = vcmp.eq.s32.totalorder %v114, 2
    %v120 = vxor.u32 %v111, 2147483648
    %v121 = vsel %vm119, %v120, %v112
    %v122 = vsel %vm115, %v118, %v121
    %v123 = vsel %vm113, nan, %v122
    %v124 = vand.u32 2147483647, %v20
    %vm125 = vcmp.le.f32.partialorder %v124, 0.7853982
    %vm126 = vcmp.lt.s32.totalorder %v20, 0
    %v127 = vand.u32 %v20, 2139095040
    %v128 = vshrl.u32 %v127, 23
    %v129 = vsub.s32 %v128, 127
    %v130 = vand.u32 2147483647, %v20
    %v131 = vand.u32 %v130, 8388607
    %v132 = vor.u32 %v131, 8388608
    %v133 = vsub.s32 0, %v132
    %v134 = vadd.s32 %v129, 1
    %vm135 = vcmp.gt.s32.totalorder %v134, 0
    %v136 = vsel %vm135, %v134, 0
    %v137 = vshrl.u32 %v136, 5
    %v138 = vand.u32 %v136, 31
    %v139 = vsub.s32 32, %v138
    %v140 = vshrl.u32 683565275, %v139
    %v141 = vshll.u32 683565275, %v138
    %v142 = vshrl.u32 2475754826, %v139
    %v143 = vor.u32 %v141, %v142
    %v144 = vshll.u32 2475754826, %v138
    %v145 = vshrl.u32 2131351028, %v139
    %v146 = vor.u32 %v144, %v145
    %v147 = vshll.u32 2131351028, %v138
    %v148 = vshrl.u32 2102212464, %v139
    %v149 = vor.u32 %v147, %v148
    %v150 = vshll.u32 2102212464, %v138
    %v151 = vshrl.u32 920167782, %v139
    %v152 = vor.u32 %v150, %v151
    %v153 = vshll.u32 920167782, %v138
    %v154 = vshrl.u32 1326507024, %v139
    %v155 = vor.u32 %v153, %v154
    %vm156 = vcmp.lt.s32.totalorder %v137, 1
    %vm157 = vcmp.lt.s32.totalorder %v137, 2
    %vm158 = vcmp.lt.s32.totalorder %v137, 3
    %vm159 = vcmp.lt.s32.totalorder %v137, 4
    %v160 = vsel %vm156, %v140, %v143
    %v161 = vsel %vm159, %v149, 2102212464
    %v162 = vsel %vm158, %v146, %v161
    %v163 = vsel %vm157, %v160, %v162
    %v164 = vsel %vm156, %v143, %v146
    %v165 = vsel %vm159, %v152, 920167782
    %v166 = vsel %vm158, %v149, %v165
    %v167 = vsel %vm157, %v164, %v166
    %v168 = vsel %vm156, %v146, %v149
    %v169 = vsel %vm159, %v155, 1326507024
    %v170 = vsel %vm158, %v152, %v169
    %v171 = vsel %vm157, %v168, %v170
    %v172 = vshll.u32 %v132, 8
    %v173 = vmul.u32.u64.compose %v172, %v171
    %v174 = vextract.low.u32 %v173
    %v175 = vextract.high.u32 %v173
    %v176 = vmul.u32.u64.compose %v172, %v167
    %v177 = vextract.low.u32 %v176
    %v178 = vextract.high.u32 %v176
    %v179 = vmul.u32 %v172, %v163
    %v180 = vadd.s32 %v175, %v177
    %vm181 = vc.u32 %v175, %v177
    %v182 = vadd.s32 %v178, 1
    %v183 = vsel %vm181, %v182, %v178
    %v184 = vadd.s32 %v179, %v183
    %v185 = vadd.s32 %v184, 536870912
    %v186 = vshrl.u32 %v185, 30
    %v187 = vshll.u32 %v186, 30
    %v188 = vsub.s32 %v184, %v187
    %vm189 = vcmp.lt.s32.totalorder %v188, 0
    %v190 = vsub.s32 0, %v188
    %v191 = vsel %vm189, %v190, %v188
    %v192 = vclz %v191
    %v193 = vsub.s32 %v192, 2
    %vm194 = vcmp.gt.s32.totalorder 0, %v193
    %v195 = vsel %vm194, 0, %v193
    %v196 = vsub.s32 32, %v195
    %v197 = vshll.u32 %v188, %v195
    %v198 = vshrl.u32 %v180, %v196
    %v199 = vor.u32 %v197, %v198
    %v200 = vsub.s32 4294967266, %v195
    %v201 = vadd.s32 %v200, 127
    %v202 = vshll.u32 %v201, 23
    %v203 = vor.u32 4788187, %v202
    %v204 = vand.u32 2147483647, %v203
    %v206 = vcvt.s32.f32 %v199
    %v207 = vmul.f32 %v206, %v204
    %v208 = vxor.u32 %v207, 2147483648
    %v209 = vsel %vm126, %v208, %v207
    %v210 = vsub.s32 4, %v186
    %v211 = vsel %vm126, %v210, %v186
    %v212 = vsel %vm125, %v20, %v209
    %v213 = vsel %vm125, 0, %v211
    %v214 = vcosq.f32.pop %v212
    %v215 = vsinq.f32.pop %v212
    %vm216 = vweird.f32 %v20
    %v217 = vadd.s32 %v213, 3
    %v218 = vand.u32 %v217, 3
    %vm219 = vcmp.lt.s32.totalorder %v218, 2
    %vm220 = vcmp.eq.s32.totalorder %v218, 0
    %v221 = vxor.u32 %v215, 2147483648
    %v222 = vsel %vm220, %v214, %v221
    %vm223 = vcmp.eq.s32.totalorder %v218, 2
    %v224 = vxor.u32 %v214, 2147483648
    %v225 = vsel %vm223, %v224, %v215
    %v226 = vsel %vm219, %v222, %v225
    %v227 = vsel %vm216, nan, %v226
    %v228 = vsub.f32 %v227, %v123
    %v229 = vlaneseq
    %v230 = vshrl.u32 %v229, 7
    %v231 = vshra.s32 %v230, 2
    %v232 = vand.u32 %v231, 1
    %v233 = vcvt.s32.f32 %v232
    %v234 = vlaneseq
    %v235 = vshrl.u32 %v234, 7
    %v236 = vsub.s32 1, %v235
    %v237 = vrot.slane %v228, %v236
    %v238 = vmul.f32 %v233, %v237
    %v239 = vlaneseq
    %v240 = vshrl.u32 %v239, 7
    %v241 = vsub.s32 1, %v240
    %v242 = vrot.slane %v123, %v241
    %v243 = vadd.f32 %v242, %v238
    %v244 = vshra.s32 %v230, 1
    %v245 = vand.u32 %v244, 1
    %v246 = vcvt.s32.f32 %v245
    %v247 = vlaneseq
    %v248 = vshrl.u32 %v247, 7
    %v249 = vsub.s32 2, %v248
    %v250 = vrot.slane %v228, %v249
    %v251 = vmul.f32 %v246, %v250
    %v252 = vlaneseq
    %v253 = vshrl.u32 %v252, 7
    %v254 = vsub.s32 2, %v253
    %v255 = vrot.slane %v123, %v254
    %v256 = vadd.f32 %v255, %v251
    %v257 = vmul.f32 %v243, %v256
    %v258 = vand.u32 %v230, 1
    %v259 = vcvt.s32.f32 %v258
    %v260 = vlaneseq
    %v261 = vshrl.u32 %v260, 7
    %v262 = vsub.s32 3, %v261
    %v263 = vrot.slane %v228, %v262
    %v264 = vmul.f32 %v259, %v263
    %v265 = vlaneseq
    %v266 = vshrl.u32 %v265, 7
    %v267 = vsub.s32 3, %v266
    %v268 = vrot.slane %v123, %v267
    %v269 = vadd.f32 %v268, %v264
    %v270 = vmul.f32 %v257, %v269
    %v271 = vlaneseq
    %v272 = vshrl.u32 %v271, 7
    %v273 = vsub.s32 0, %v272
    %v274 = vrot.slane %v123, %v273
    %v275 = vmul.f32 %v274, %v270
    %v276 = vlaneseq
    %v277 = vshrl.u32 %v276, 7
    %v278 = vsub.s32 0, %v277
    %v279 = vrot.slane %v227, %v278
    %v280 = vmul.f32 %v279, %v270
    %v281 = vld [vmem:[%s1] sm:$0xf]
    %v282 = vld [vmem:[%s1 + $0x4] sm:$0xf]
    %v283 = vpack.c.bf16 %v280, %v275
    %v286 = vunpack.c.l.b16 %v281
    %v287 = vunpack.c.l.b16 %v282
    %v288 = vpack.c.b16 %v287, %v286
    %vm289 = vcmask 130048
    %v291 = vsel %vm289, %v288, 0
    %293 = vmatprep.subr.bf16.mxu0 0
    %294 = vmatpush1.bf16.msra.mxu0 %v283
    %295 = vmatprep.subr.bf16.mxu0 0
    %296 = vmatpush1.bf16.msra.mxu0 0
    %297 = vmatprep.subr.bf16.mxu0 0
    %298 = vmatpush1.bf16.msra.mxu0 0
    %299 = vmatprep.subr.bf16.mxu0 0
    %300 = vmatpush1.bf16.msra.mxu0 0
    %301 = vmatprep.subr.bf16.mxu0 0
    %302 = vmatpush1.bf16.msra.mxu0 0
    %303 = vmatprep.subr.bf16.mxu0 0
    %304 = vmatpush1.bf16.msra.mxu0 0
    %305 = vmatprep.subr.bf16.mxu0 0
    %306 = vmatpush1.bf16.msra.mxu0 0
    %307 = vmatprep.subr.bf16.mxu0 0
    %308 = vmatpush1.bf16.msra.mxu0 0
    %309 = vmatprep.subr.bf16.mxu0 0
    %310 = vmatpush1.bf16.msra.mxu0 0
    %311 = vmatprep.subr.bf16.mxu0 0
    %312 = vmatpush1.bf16.msra.mxu0 0
    %313 = vmatprep.subr.bf16.mxu0 0
    %314 = vmatpush1.bf16.msra.mxu0 0
    %315 = vmatprep.subr.bf16.mxu0 0
    %316 = vmatpush1.bf16.msra.mxu0 0
    %317 = vmatprep.subr.bf16.mxu0 0
    %318 = vmatpush1.bf16.msra.mxu0 0
    %319 = vmatprep.subr.bf16.mxu0 0
    %320 = vmatpush1.bf16.msra.mxu0 0
    %321 = vmatprep.subr.bf16.mxu0 0
    %322 = vmatpush1.bf16.msra.mxu0 0
    %323 = vmatprep.subr.bf16.mxu0 0
    %324 = vmatpush1.bf16.msra.mxu0 0
    %325 = vmatprep.mubr.bf16.mxu0 0
    %326 = vmatmul.mubr.bf16.gmra.mrb[0].mxu0 %v291
    %v327 = vpop.f32.mrb[0].mxu0
    %v328 = vadd.f32 0.0, %v327
    %v329 = vpop.f32.mrb[0].mxu0
    %v330 = vpop.f32.mrb[0].mxu0
    %v331 = vadd.f32 0.0, %v330
    %v332 = vpop.f32.mrb[0].mxu0
    %333 = vdwg.mxu0
    %v334 = vpack.c.bf16 %v331, %v328
    %v335 = vmul.bf16 %v334, %v334
    %v336 = vld [vmem:[%s2] sm:$0xf]
    %v337 = vld [vmem:[%s3] sm:$0xff]
    %339 = vset.pattern.permute.xlu0 0
    %340 = vperm.xlu0 %339, %v337
    %v341 = vpop.permute.xlu0 %340
    %v344 = vsel %vm289, %v336, 0
    %346 = vmatprep.subr.bf16.mxu0 0
    %347 = vmatpush1.bf16.msra.mxu0 %v335
    %348 = vmatprep.subr.bf16.mxu0 0
    %349 = vmatpush1.bf16.msra.mxu0 0
    %350 = vmatprep.subr.bf16.mxu0 0
    %351 = vmatpush1.bf16.msra.mxu0 0
    %352 = vmatprep.subr.bf16.mxu0 0
    %353 = vmatpush1.bf16.msra.mxu0 0
    %354 = vmatprep.subr.bf16.mxu0 0
    %355 = vmatpush1.bf16.msra.mxu0 0
    %356 = vmatprep.subr.bf16.mxu0 0
    %357 = vmatpush1.bf16.msra.mxu0 0
    %358 = vmatprep.subr.bf16.mxu0 0
    %359 = vmatpush1.bf16.msra.mxu0 0
    %360 = vmatprep.subr.bf16.mxu0 0
    %361 = vmatpush1.bf16.msra.mxu0 0
    %362 = vmatprep.subr.bf16.mxu0 0
    %363 = vmatpush1.bf16.msra.mxu0 0
    %364 = vmatprep.subr.bf16.mxu0 0
    %365 = vmatpush1.bf16.msra.mxu0 0
    %366 = vmatprep.subr.bf16.mxu0 0
    %367 = vmatpush1.bf16.msra.mxu0 0
    %368 = vmatprep.subr.bf16.mxu0 0
    %369 = vmatpush1.bf16.msra.mxu0 0
    %370 = vmatprep.subr.bf16.mxu0 0
    %371 = vmatpush1.bf16.msra.mxu0 0
    %372 = vmatprep.subr.bf16.mxu0 0
    %373 = vmatpush1.bf16.msra.mxu0 0
    %374 = vmatprep.subr.bf16.mxu0 0
    %375 = vmatpush1.bf16.msra.mxu0 0
    %376 = vmatprep.subr.bf16.mxu0 0
    %377 = vmatpush1.bf16.msra.mxu0 0
    %378 = vmatprep.mubr.bf16.mxu0 0
    %379 = vmatmul.mubr.bf16.gmra.mrb[0].mxu0 %v344
    %v380 = vpop.f32.mrb[0].mxu0
    %v381 = vadd.f32 %v341, %v380
    %v382 = vpop.f32.mrb[0].mxu0
    %v383 = vpop.f32.mrb[0].mxu0
    %v384 = vpop.f32.mrb[0].mxu0
    %385 = vdwg.mxu0
    %v386 = vrot.slane %v381, 4
    %v387 = vmax.f32 %v381, %v386
    %v388 = vrot.slane %v387, 2
    %v389 = vmax.f32 %v387, %v388
    %v390 = vrot.slane %v389, 1
    %v391 = vmax.f32 %v389, %v390
    %v392 = vsub.f32 %v381, %v391
    %v393 = vmul.f32 %v392, 1.442695
    %v394 = vpow.pop %v393
    %v395 = vrot.slane %v394, 4
    %v396 = vadd.f32 %v394, %v395
    %v397 = vrot.slane %v396, 2
    %v398 = vadd.f32 %v396, %v397
    %v399 = vrot.slane %v398, 1
    %v400 = vadd.f32 %v398, %v399
    %v401 = vrcp.pop %v400
    %v402 = vmul.f32 %v394, %v401
    %403 = vst [vmem:[#allocation2] sm:$0xff] %v402
    // Predicated region
    $region18: #{tpu_custom_call.1} parent=1 // pred_check
      _
    $region19: #{tpu_custom_call.1} parent=1 // pred_check_branch
      %405 = sbr.rel (0) target = $region21
    $region20: #{tpu_custom_call.1} parent=1 // pred_region
      %s407 = ssub.s32 128, 128
      %408 = vsyncadd [#allocation3], %s407
      %s410 = sshll.u32 [#allocation2], 4
      %s411 = int_to_ptr.vmem [resolvable:$true] %s410
      %413 = dma.vmem_to_hbm [thread:$0]  %s411, 128, %s4, [#allocation3]
    $region21: #{tpu_custom_call.1} parent=1 // pred_fallthru
      _
    // Predicated region
    $region22: #{tpu_custom_call.1} parent=1 // pred_check
      _
    $region23: #{tpu_custom_call.1} parent=1 // pred_check_branch
      %415 = sbr.rel (0) target = $region25
    $region24: #{tpu_custom_call.1} parent=1 // pred_region
      %416 = dma.done [#allocation3], 128
    $region25: #{tpu_custom_call.1} parent=1 // pred_fallthru
      _
    %417 = vsyncpa [#allocation3], 1

// kernel: tpu_custom_call.1
$region0: #{tpu_custom_call.1}
  #allocation0 [shape = 'u32[]', space=smem, size = 0x4, offset = 0x4, fixed_abs, tag = 'smem constant byte address 0x4 - core index']
  #allocation1 [shape = 'u32[144,128]{1,0:T(1,128)}', space=vmem, size = 0x12000, scoped, tag = 'internal scratch']
  %s0 = inlined_call_operand.vmem [shape: f32[4,128], index: 0, kind: input, shape index: {}]
  %s1 = inlined_call_operand.vmem [shape: bf16[16,16], index: 1, kind: input, shape index: {}]
  %s2 = inlined_call_operand.vmem [shape: bf16[8,16], index: 2, kind: input, shape index: {}]
  %s3 = inlined_call_operand.vmem [shape: f32[8,1], index: 3, kind: input, shape index: {}]
  %s4 = inlined_call_operand.hbm [shape: f32[8,128], index: 4, kind: output, shape index: {}]
  %s5 = sld [smem:[#allocation0]]
  $region26: #{tpu_custom_call.1} parent=0
    _
  %s7 = ssub.s32 1, %s5
  %s8 = scalar_select 0, %s7, %s5
  $region1: #{tpu_custom_call.1} parent=0
    #allocation2 [shape = 'u8[4096]{0}', space=vmem, size = 0x1000, scoped, tag = 'output window, operand 0, single buffered']
    #allocation3 [shape = 's32[1]{0}', space=sflag, size = 0x4, scoped, tag = 'scoped memory for tpu_custom_call.1']
    %9 = vsyncpa [#allocation3], 0
    // Predicated region
    $region2: #{tpu_custom_call.1} parent=1 // pred_check
      _
    $region3: #{tpu_custom_call.1} parent=1 // pred_check_branch
      %11 = sbr.rel (0) target = $region5
    $region4: #{tpu_custom_call.1} parent=1 // pred_region
      _
    $region5: #{tpu_custom_call.1} parent=1 // pred_fallthru
      _
    // Predicated region
    $region6: #{tpu_custom_call.1} parent=1 // pred_check
      _
    $region7: #{tpu_custom_call.1} parent=1 // pred_check_branch
      %13 = sbr.rel (0) target = $region9
    $region8: #{tpu_custom_call.1} parent=1 // pred_region
      _
    $region9: #{tpu_custom_call.1} parent=1 // pred_fallthru
      _
    // Predicated region
    $region10: #{tpu_custom_call.1} parent=1 // pred_check
      _
    $region11: #{tpu_custom_call.1} parent=1 // pred_check_branch
      %15 = sbr.rel (0) target = $region13
    $region12: #{tpu_custom_call.1} parent=1 // pred_region
      _
    $region13: #{tpu_custom_call.1} parent=1 // pred_fallthru
      _
    // Predicated region
    $region14: #{tpu_custom_call.1} parent=1 // pred_check
      _
    $region15: #{tpu_custom_call.1} parent=1 // pred_check_branch
      %17 = sbr.rel (0) target = $region17
    $region16: #{tpu_custom_call.1} parent=1 // pred_region
      _
    $region17: #{tpu_custom_call.1} parent=1 // pred_fallthru
      _
    %v19 = vld [vmem:[%s0] sm:$0xf]
    %v20 = vmul.f32 %v19, 0.5
    %v21 = vand.u32 2147483647, %v20
    %vm22 = vcmp.le.f32.partialorder %v21, 0.7853982
    %vm23 = vcmp.lt.s32.totalorder %v20, 0
    %v24 = vand.u32 %v20, 2139095040
    %v25 = vshrl.u32 %v24, 23
    %v26 = vsub.s32 %v25, 127
    %v27 = vand.u32 2147483647, %v20
    %v28 = vand.u32 %v27, 8388607
    %v29 = vor.u32 %v28, 8388608
    %v30 = vsub.s32 0, %v29
    %v31 = vadd.s32 %v26, 1
    %vm32 = vcmp.gt.s32.totalorder %v31, 0
    %v33 = vsel %vm32, %v31, 0
    %v34 = vshrl.u32 %v33, 5
    %v35 = vand.u32 %v33, 31
    %v36 = vsub.s32 32, %v35
    %v37 = vshrl.u32 683565275, %v36
    %v38 = vshll.u32 683565275, %v35
    %v39 = vshrl.u32 2475754826, %v36
    %v40 = vor.u32 %v38, %v39
    %v41 = vshll.u32 2475754826, %v35
    %v42 = vshrl.u32 2131351028, %v36
    %v43 = vor.u32 %v41, %v42
    %v44 = vshll.u32 2131351028, %v35
    %v45 = vshrl.u32 2102212464, %v36
    %v46 = vor.u32 %v44, %v45
    %v47 = vshll.u32 2102212464, %v35
    %v48 = vshrl.u32 920167782, %v36
    %v49 = vor.u32 %v47, %v48
    %v50 = vshll.u32 920167782, %v35
    %v51 = vshrl.u32 1326507024, %v36
    %v52 = vor.u32 %v50, %v51
    %vm53 = vcmp.lt.s32.totalorder %v34, 1
    %vm54 = vcmp.lt.s32.totalorder %v34, 2
    %vm55 = vcmp.lt.s32.totalorder %v34, 3
    %vm56 = vcmp.lt.s32.totalorder %v34, 4
    %v57 = vsel %vm53, %v37, %v40
    %v58 = vsel %vm56, %v46, 2102212464
    %v59 = vsel %vm55, %v43, %v58
    %v60 = vsel %vm54, %v57, %v59
    %v61 = vsel %vm53, %v40, %v43
    %v62 = vsel %vm56, %v49, 920167782
    %v63 = vsel %vm55, %v46, %v62
    %v64 = vsel %vm54, %v61, %v63
    %v65 = vsel %vm53, %v43, %v46
    %v66 = vsel %vm56, %v52, 1326507024
    %v67 = vsel %vm55, %v49, %v66
    %v68 = vsel %vm54, %v65, %v67
    %v69 = vshll.u32 %v29, 8
    %v70 = vmul.u32.u64.compose %v69, %v68
    %v71 = vextract.low.u32 %v70
    %v72 = vextract.high.u32 %v70
    %v73 = vmul.u32.u64.compose %v69, %v64
    %v74 = vextract.low.u32 %v73
    %v75 = vextract.high.u32 %v73
    %v76 = vmul.u32 %v69, %v60
    %v77 = vadd.s32 %v72, %v74
    %vm78 = vc.u32 %v72, %v74
    %v79 = vadd.s32 %v75, 1
    %v80 = vsel %vm78, %v79, %v75
    %v81 = vadd.s32 %v76, %v80
    %v82 = vadd.s32 %v81, 536870912
    %v83 = vshrl.u32 %v82, 30
    %v84 = vshll.u32 %v83, 30
    %v85 = vsub.s32 %v81, %v84
    %vm86 = vcmp.lt.s32.totalorder %v85, 0
    %v87 = vsub.s32 0, %v85
    %v88 = vsel %vm86, %v87, %v85
    %v89 = vclz %v88
    %v90 = vsub.s32 %v89, 2
    %vm91 = vcmp.gt.s32.totalorder 0, %v90
    %v92 = vsel %vm91, 0, %v90
    %v93 = vsub.s32 32, %v92
    %v94 = vshll.u32 %v85, %v92
    %v95 = vshrl.u32 %v77, %v93
    %v96 = vor.u32 %v94, %v95
    %v97 = vsub.s32 4294967266, %v92
    %v98 = vadd.s32 %v97, 127
    %v99 = vshll.u32 %v98, 23
    %v100 = vor.u32 4788187, %v99
    %v101 = vand.u32 2147483647, %v100
    %v103 = vcvt.s32.f32 %v96
    %v104 = vmul.f32 %v103, %v101
    %v105 = vxor.u32 %v104, 2147483648
    %v106 = vsel %vm23, %v105, %v104
    %v107 = vsub.s32 4, %v83
    %v108 = vsel %vm23, %v107, %v83
    %v109 = vsel %vm22, %v20, %v106
    %v110 = vsel %vm22, 0, %v108
    %v111 = vcosq.f32.pop %v109
    %v112 = vsinq.f32.pop %v109
    %vm113 = vweird.f32 %v20
    %v114 = vand.u32 %v110, 3
    %vm115 = vcmp.lt.s32.totalorder %v114, 2
    %vm116 = vcmp.eq.s32.totalorder %v114, 0
    %v117 = vxor.u32 %v112, 2147483648
    %v118 = vsel %vm116, %v111, %v117
    %vm119 = vcmp.eq.s32.totalorder %v114, 2
    %v120 = vxor.u32 %v111, 2147483648
    %v121 = vsel %vm119, %v120, %v112
    %v122 = vsel %vm115, %v118, %v121
    %v123 = vsel %vm113, nan, %v122
    %v124 = vand.u32 2147483647, %v20
    %vm125 = vcmp.le.f32.partialorder %v124, 0.7853982
    %vm126 = vcmp.lt.s32.totalorder %v20, 0
    %v127 = vand.u32 %v20, 2139095040
    %v128 = vshrl.u32 %v127, 23
    %v129 = vsub.s32 %v128, 127
    %v130 = vand.u32 2147483647, %v20
    %v131 = vand.u32 %v130, 8388607
    %v132 = vor.u32 %v131, 8388608
    %v133 = vsub.s32 0, %v132
    %v134 = vadd.s32 %v129, 1
    %vm135 = vcmp.gt.s32.totalorder %v134, 0
    %v136 = vsel %vm135, %v134, 0
    %v137 = vshrl.u32 %v136, 5
    %v138 = vand.u32 %v136, 31
    %v139 = vsub.s32 32, %v138
    %v140 = vshrl.u32 683565275, %v139
    %v141 = vshll.u32 683565275, %v138
    %v142 = vshrl.u32 2475754826, %v139
    %v143 = vor.u32 %v141, %v142
    %v144 = vshll.u32 2475754826, %v138
    %v145 = vshrl.u32 2131351028, %v139
    %v146 = vor.u32 %v144, %v145
    %v147 = vshll.u32 2131351028, %v138
    %v148 = vshrl.u32 2102212464, %v139
    %v149 = vor.u32 %v147, %v148
    %v150 = vshll.u32 2102212464, %v138
    %v151 = vshrl.u32 920167782, %v139
    %v152 = vor.u32 %v150, %v151
    %v153 = vshll.u32 920167782, %v138
    %v154 = vshrl.u32 1326507024, %v139
    %v155 = vor.u32 %v153, %v154
    %vm156 = vcmp.lt.s32.totalorder %v137, 1
    %vm157 = vcmp.lt.s32.totalorder %v137, 2
    %vm158 = vcmp.lt.s32.totalorder %v137, 3
    %vm159 = vcmp.lt.s32.totalorder %v137, 4
    %v160 = vsel %vm156, %v140, %v143
    %v161 = vsel %vm159, %v149, 2102212464
    %v162 = vsel %vm158, %v146, %v161
    %v163 = vsel %vm157, %v160, %v162
    %v164 = vsel %vm156, %v143, %v146
    %v165 = vsel %vm159, %v152, 920167782
    %v166 = vsel %vm158, %v149, %v165
    %v167 = vsel %vm157, %v164, %v166
    %v168 = vsel %vm156, %v146, %v149
    %v169 = vsel %vm159, %v155, 1326507024
    %v170 = vsel %vm158, %v152, %v169
    %v171 = vsel %vm157, %v168, %v170
    %v172 = vshll.u32 %v132, 8
    %v173 = vmul.u32.u64.compose %v172, %v171
    %v174 = vextract.low.u32 %v173
    %v175 = vextract.high.u32 %v173
    %v176 = vmul.u32.u64.compose %v172, %v167
    %v177 = vextract.low.u32 %v176
    %v178 = vextract.high.u32 %v176
    %v179 = vmul.u32 %v172, %v163
    %v180 = vadd.s32 %v175, %v177
    %vm181 = vc.u32 %v175, %v177
    %v182 = vadd.s32 %v178, 1
    %v183 = vsel %vm181, %v182, %v178
    %v184 = vadd.s32 %v179, %v183
    %v185 = vadd.s32 %v184, 536870912
    %v186 = vshrl.u32 %v185, 30
    %v187 = vshll.u32 %v186, 30
    %v188 = vsub.s32 %v184, %v187
    %vm189 = vcmp.lt.s32.totalorder %v188, 0
    %v190 = vsub.s32 0, %v188
    %v191 = vsel %vm189, %v190, %v188
    %v192 = vclz %v191
    %v193 = vsub.s32 %v192, 2
    %vm194 = vcmp.gt.s32.totalorder 0, %v193
    %v195 = vsel %vm194, 0, %v193
    %v196 = vsub.s32 32, %v195
    %v197 = vshll.u32 %v188, %v195
    %v198 = vshrl.u32 %v180, %v196
    %v199 = vor.u32 %v197, %v198
    %v200 = vsub.s32 4294967266, %v195
    %v201 = vadd.s32 %v200, 127
    %v202 = vshll.u32 %v201, 23
    %v203 = vor.u32 4788187, %v202
    %v204 = vand.u32 2147483647, %v203
    %v206 = vcvt.s32.f32 %v199
    %v207 = vmul.f32 %v206, %v204
    %v208 = vxor.u32 %v207, 2147483648
    %v209 = vsel %vm126, %v208, %v207
    %v210 = vsub.s32 4, %v186
    %v211 = vsel %vm126, %v210, %v186
    %v212 = vsel %vm125, %v20, %v209
    %v213 = vsel %vm125, 0, %v211
    %v214 = vcosq.f32.pop %v212
    %v215 = vsinq.f32.pop %v212
    %vm216 = vweird.f32 %v20
    %v217 = vadd.s32 %v213, 3
    %v218 = vand.u32 %v217, 3
    %vm219 = vcmp.lt.s32.totalorder %v218, 2
    %vm220 = vcmp.eq.s32.totalorder %v218, 0
    %v221 = vxor.u32 %v215, 2147483648
    %v222 = vsel %vm220, %v214, %v221
    %vm223 = vcmp.eq.s32.totalorder %v218, 2
    %v224 = vxor.u32 %v214, 2147483648
    %v225 = vsel %vm223, %v224, %v215
    %v226 = vsel %vm219, %v222, %v225
    %v227 = vsel %vm216, nan, %v226
    %v228 = vsub.f32 %v227, %v123
    %v229 = vlaneseq
    %v230 = vshrl.u32 %v229, 7
    %v231 = vshra.s32 %v230, 2
    %v232 = vand.u32 %v231, 1
    %v233 = vcvt.s32.f32 %v232
    %v234 = vlaneseq
    %v235 = vshrl.u32 %v234, 7
    %v236 = vsub.s32 1, %v235
    %v237 = vrot.slane %v228, %v236
    %v238 = vmul.f32 %v233, %v237
    %v239 = vlaneseq
    %v240 = vshrl.u32 %v239, 7
    %v241 = vsub.s32 1, %v240
    %v242 = vrot.slane %v123, %v241
    %v243 = vadd.f32 %v242, %v238
    %v244 = vshra.s32 %v230, 1
    %v245 = vand.u32 %v244, 1
    %v246 = vcvt.s32.f32 %v245
    %v247 = vlaneseq
    %v248 = vshrl.u32 %v247, 7
    %v249 = vsub.s32 2, %v248
    %v250 = vrot.slane %v228, %v249
    %v251 = vmul.f32 %v246, %v250
    %v252 = vlaneseq
    %v253 = vshrl.u32 %v252, 7
    %v254 = vsub.s32 2, %v253
    %v255 = vrot.slane %v123, %v254
    %v256 = vadd.f32 %v255, %v251
    %v257 = vmul.f32 %v243, %v256
    %v258 = vand.u32 %v230, 1
    %v259 = vcvt.s32.f32 %v258
    %v260 = vlaneseq
    %v261 = vshrl.u32 %v260, 7
    %v262 = vsub.s32 3, %v261
    %v263 = vrot.slane %v228, %v262
    %v264 = vmul.f32 %v259, %v263
    %v265 = vlaneseq
    %v266 = vshrl.u32 %v265, 7
    %v267 = vsub.s32 3, %v266
    %v268 = vrot.slane %v123, %v267
    %v269 = vadd.f32 %v268, %v264
    %v270 = vmul.f32 %v257, %v269
    %v271 = vlaneseq
    %v272 = vshrl.u32 %v271, 7
    %v273 = vsub.s32 0, %v272
    %v274 = vrot.slane %v123, %v273
    %v275 = vmul.f32 %v274, %v270
    %v276 = vlaneseq
    %v277 = vshrl.u32 %v276, 7
    %v278 = vsub.s32 0, %v277
    %v279 = vrot.slane %v227, %v278
    %v280 = vmul.f32 %v279, %v270
    %v281 = vld [vmem:[%s1] sm:$0xf]
    %v282 = vld [vmem:[%s1 + $0x4] sm:$0xf]
    %v283 = vpack.c.bf16 %v280, %v275
    %v286 = vunpack.c.l.b16 %v281
    %v287 = vunpack.c.l.b16 %v282
    %v288 = vpack.c.b16 %v287, %v286
    %vm289 = vcmask 130048
    %v291 = vsel %vm289, %v288, 0
    %293 = vmatprep.subr.bf16.mxu0 0
    %294 = vmatpush1.bf16.msra.mxu0 %v283
    %295 = vmatprep.subr.bf16.mxu0 0
    %296 = vmatpush1.bf16.msra.mxu0 0
    %297 = vmatprep.subr.bf16.mxu0 0
    %298 = vmatpush1.bf16.msra.mxu0 0
    %299 = vmatprep.subr.bf16.mxu0 0
    %300 = vmatpush1.bf16.msra.mxu0 0
    %301 = vmatprep.subr.bf16.mxu0 0
    %302 = vmatpush1.bf16.msra.mxu0 0
    %303 = vmatprep.subr.bf16.mxu0 0
    %304 = vmatpush1.bf16.msra.mxu0 0
    %305 = vmatprep.subr.bf16.mxu0 0
    %306 = vmatpush1.bf16.msra.mxu0 0
    %307 = vmatprep.subr.bf16.mxu0 0
    %308 = vmatpush1.bf16.msra.mxu0 0
    %309 = vmatprep.subr.bf16.mxu0 0
    %310 = vmatpush1.bf16.msra.mxu0 0
    %311 = vmatprep.subr.bf16.mxu0 0
    %312 = vmatpush1.bf16.msra.mxu0 0
    %313 = vmatprep.subr.bf16.mxu0 0
    %314 = vmatpush1.bf16.msra.mxu0 0
    %315 = vmatprep.subr.bf16.mxu0 0
    %316 = vmatpush1.bf16.msra.mxu0 0
    %317 = vmatprep.subr.bf16.mxu0 0
    %318 = vmatpush1.bf16.msra.mxu0 0
    %319 = vmatprep.subr.bf16.mxu0 0
    %320 = vmatpush1.bf16.msra.mxu0 0
    %321 = vmatprep.subr.bf16.mxu0 0
    %322 = vmatpush1.bf16.msra.mxu0 0
    %323 = vmatprep.subr.bf16.mxu0 0
    %324 = vmatpush1.bf16.msra.mxu0 0
    %325 = vmatprep.mubr.bf16.mxu0 0
    %326 = vmatmul.mubr.bf16.gmra.mrb[0].mxu0 %v291
    %v327 = vpop.f32.mrb[0].mxu0
    %v328 = vadd.f32 0.0, %v327
    %v329 = vpop.f32.mrb[0].mxu0
    %v330 = vpop.f32.mrb[0].mxu0
    %v331 = vadd.f32 0.0, %v330
    %v332 = vpop.f32.mrb[0].mxu0
    %333 = vdwg.mxu0
    %v334 = vpack.c.bf16 %v331, %v328
    %v335 = vmul.bf16 %v334, %v334
    %v336 = vld [vmem:[%s2] sm:$0xf]
    %v337 = vld [vmem:[%s3] sm:$0xff]
    %339 = vset.pattern.permute.xlu0 0
    %340 = vperm.xlu0 %339, %v337
    %v341 = vpop.permute.xlu0 %340
    %v344 = vsel %vm289, %v336, 0
    %346 = vmatprep.subr.bf16.mxu0 0
    %347 = vmatpush1.bf16.msra.mxu0 %v335
    %348 = vmatprep.subr.bf16.mxu0 0
    %349 = vmatpush1.bf16.msra.mxu0 0
    %350 = vmatprep.subr.bf16.mxu0 0
    %351 = vmatpush1.bf16.msra.mxu0 0
    %352 = vmatprep.subr.bf16.mxu0 0
    %353 = vmatpush1.bf16.msra.mxu0 0
    %354 = vmatprep.subr.bf16.mxu0 0
    %355 = vmatpush1.bf16.msra.mxu0 0
    %356 = vmatprep.subr.bf16.mxu0 0
    %357 = vmatpush1.bf16.msra.mxu0 0
    %358 = vmatprep.subr.bf16.mxu0 0
    %359 = vmatpush1.bf16.msra.mxu0 0
    %360 = vmatprep.subr.bf16.mxu0 0
    %361 = vmatpush1.bf16.msra.mxu0 0
    %362 = vmatprep.subr.bf16.mxu0 0
    %363 = vmatpush1.bf16.msra.mxu0 0
    %364 = vmatprep.subr.bf16.mxu0 0
    %365 = vmatpush1.bf16.msra.mxu0 0
    %366 = vmatprep.subr.bf16.mxu0 0
    %367 = vmatpush1.bf16.msra.mxu0 0
    %368 = vmatprep.subr.bf16.mxu0 0
    %369 = vmatpush1.bf16.msra.mxu0 0
    %370 = vmatprep.subr.bf16.mxu0 0
    %371 = vmatpush1.bf16.msra.mxu0 0
    %372 = vmatprep.subr.bf16.mxu0 0
    %373 = vmatpush1.bf16.msra.mxu0 0
    %374 = vmatprep.subr.bf16.mxu0 0
    %375 = vmatpush1.bf16.msra.mxu0 0
    %376 = vmatprep.subr.bf16.mxu0 0
    %377 = vmatpush1.bf16.msra.mxu0 0
    %378 = vmatprep.mubr.bf16.mxu0 0
    %379 = vmatmul.mubr.bf16.gmra.mrb[0].mxu0 %v344
    %v380 = vpop.f32.mrb[0].mxu0
    %v381 = vadd.f32 %v341, %v380
    %v382 = vpop.f32.mrb[0].mxu0
    %v383 = vpop.f32.mrb[0].mxu0
    %v384 = vpop.f32.mrb[0].mxu0
    %385 = vdwg.mxu0
    %v386 = vrot.slane %v381, 4
    %v387 = vmax.f32 %v381, %v386
    %v388 = vrot.slane %v387, 2
    %v389 = vmax.f32 %v387, %v388
    %v390 = vrot.slane %v389, 1
    %v391 = vmax.f32 %v389, %v390
    %v392 = vsub.f32 %v381, %v391
    %v393 = vmul.f32 %v392, 1.442695
    %v394 = vpow.pop %v393
    %v395 = vrot.slane %v394, 4
    %v396 = vadd.f32 %v394, %v395
    %v397 = vrot.slane %v396, 2
    %v398 = vadd.f32 %v396, %v397
    %v399 = vrot.slane %v398, 1
    %v400 = vadd.f32 %v398, %v399
    %v401 = vrcp.pop %v400
    %v402 = vmul.f32 %v394, %v401
    %403 = vst [vmem:[#allocation2] sm:$0xff] %v402
    // Predicated region
    $region18: #{tpu_custom_call.1} parent=1 // pred_check
      _
    $region19: #{tpu_custom_call.1} parent=1 // pred_check_branch
      %405 = sbr.rel (0) target = $region21
    $region20: #{tpu_custom_call.1} parent=1 // pred_region
      %s407 = ssub.s32 128, 128
      %408 = vsyncadd [#allocation3], %s407
      %s410 = sshll.u32 [#allocation2], 4
      %s411 = int_to_ptr.vmem [resolvable:$true] %s410
      %413 = dma.vmem_to_hbm [thread:$0]  %s411, 128, %s4, [#allocation3]
    $region21: #{tpu_custom_call.1} parent=1 // pred_fallthru
      _
    // Predicated region
    $region22: #{tpu_custom_call.1} parent=1 // pred_check
      _
    $region23: #{tpu_custom_call.1} parent=1 // pred_check_branch
      %415 = sbr.rel (0) target = $region25
    $region24: #{tpu_custom_call.1} parent=1 // pred_region
      %416 = dma.done [#allocation3], 128
    $region25: #{tpu_custom_call.1} parent=1 // pred_fallthru
      _
    %417 = vsyncpa [#allocation3], 1

</llo_original>
